<compile_context>
chip_gen: v7x
topology: tpu7x:2x2x1
jax: 0.10.0
libtpu: 0.0.40
codegen_flags: <defaults>
</compile_context>

<pallas_src>
import jax
import jax.numpy as jnp
from jax import lax
from jax.experimental import pallas as pl
from jax.experimental.pallas import tpu as pltpu

N_FILTERS = 8          # hp.N_FILTERS
H = W = 8              # spatial size implied by `hp.N_FILTERS * 8 * 8`
BN_EPS = 1e-5          # PyTorch BatchNorm2d default eps


def output_fused_kernel(x_ref, wc_ref, gamma_ref, beta_ref, w1t_hbm_ref,
                        b1_ref, w2_ref, b2_ref, o_ref, w1t_vmem, dma_sem):
    """Fully fused forward pass.

    x_ref      : (C, B*P)  activations, lane-dense; column b*P + p is pixel p of
                           sample b (P = H*W)
    wc_ref     : (C, C)    1x1-conv weight (out, in)
    gamma_ref  : (C, 1)    BN weight
    beta_ref   : (C, 1)    BN bias
    w1t_hbm_ref: (D, D)    Linear-1 weight, PRE-TRANSPOSED (in, out), bf16, in HBM
    b1_ref     : (1, D)    Linear-1 bias
    w2_ref     : (1, D)    Linear-2 weight
    b2_ref     : (1, 1)    Linear-2 bias
    o_ref      : (B, 1)    output
    w1t_vmem   : (D, D)    bf16 VMEM landing buffer for w1
    dma_sem    :           DMA completion semaphore
    """
    C = wc_ref.shape[0]
    BP = x_ref.shape[1]
    D = w1t_vmem.shape[0]
    P = D // C
    B = BP // P

    # Kick off the dominant DMA (the 0.5 MiB bf16 Linear-1 weight) immediately so
    # the conv/BN/flatten prologue runs underneath it.
    w1_copy = pltpu.make_async_copy(w1t_hbm_ref, w1t_vmem, dma_sem)
    w1_copy.start()

    # --- 1x1 conv (no bias): channel-mixing matmul over the lane-dense slab. ---
    x = x_ref[...]                                                      # (C, B*P)
    y = jnp.dot(wc_ref[...], x,
                preferred_element_type=jnp.float32,
                precision=lax.Precision.HIGHEST)                        # (C, B*P)

    # --- BatchNorm2d, training-mode batch statistics (biased variance), folded
    #     into one per-channel scale/shift.  Stats = single cross-lane reductions.
    # TODO(synk): PyTorch also updates running_mean/running_var buffers as a
    # training side effect; that state update is not part of the returned value
    # and is not emitted here.
    n = float(BP)
    mean = jnp.sum(y, axis=1, keepdims=True) / n                        # (C, 1)
    var = jnp.sum((y - mean) ** 2, axis=1, keepdims=True) / n           # (C, 1)
    scale = gamma_ref[...] * lax.rsqrt(var + BN_EPS)                    # (C, 1)
    shift = beta_ref[...] - mean * scale                                # (C, 1)
    f_chan = jnp.maximum(y * scale + shift, 0.0)                        # (C, B*P)

    # --- PyTorch x.view(N, -1) flatten, built in registers (no VMEM scratch, no
    #     masked partial stores): per sample, gather the (C, P) tile into one
    #     lane-dense (1, C*P) row.
    rows = []
    for b in range(B):
        yb = f_chan[:, b * P:(b + 1) * P]                               # (C, P)
        rows.append(
            jnp.concatenate([yb[c:c + 1, :] for c in range(C)], axis=1))  # (1, D)
    f = jnp.concatenate(rows, axis=0)                                   # (B, D)

    # --- Linear(D, D): w1 arrives pre-transposed (K, N) and in bf16, so the MXU
    #     consumes it natively with f32 accumulation; no in-kernel relayout.
    w1_copy.wait()
    h = jnp.dot(f.astype(jnp.bfloat16), w1t_vmem[...],
                preferred_element_type=jnp.float32) + b1_ref[...]       # (B, D)
    h = jnp.maximum(h, 0.0)                                             # ReLU

    # --- Linear(D, 1): single output column -> VPU multiply + lane reduction
    #     (avoids a degenerate N=1 MXU matmul).
    z = jnp.sum(h * w2_ref[...], axis=1, keepdims=True) + b2_ref[...]   # (B, 1)
    o_ref[...] = jnp.tanh(z)                                            # Tanh


def _vmem_spec():
    return pl.BlockSpec(memory_space=pltpu.MemorySpace.VMEM)


def prepare_linear1_weight(w1_f32):
    """One-time parameter prep (NOT on the per-call path): transpose to (in, out)
    so the MXU sees the natural (K, N) orientation, and cast to bf16 to halve the
    dominant HBM fetch.  Accumulation in the kernel stays float32."""
    return jnp.asarray(w1_f32.T, dtype=jnp.bfloat16)


@jax.jit
def output_forward(x_nchw, wc, gamma, beta, w1t_bf16, b1, w2, b2):
    B, C, Hh, Ww = x_nchw.shape
    P = Hh * Ww
    D = C * P
    # Lane-dense (C, B*P) activation slab: one 4 KiB transpose in the wrapper.
    x_cbp = jnp.transpose(x_nchw, (1, 0, 2, 3)).reshape(C, B * P)
    return pl.pallas_call(
        output_fused_kernel,
        out_shape=jax.ShapeDtypeStruct((B, 1), jnp.float32),
        in_specs=[_vmem_spec(),                      # x  (C, B*P)
                  _vmem_spec(),                      # wc
                  _vmem_spec(),                      # gamma
                  _vmem_spec(),                      # beta
                  pl.BlockSpec(memory_space=pl.ANY), # w1t stays in HBM; manual DMA
                  _vmem_spec(),                      # b1
                  _vmem_spec(),                      # w2
                  _vmem_spec()],                     # b2
        out_specs=_vmem_spec(),
        scratch_shapes=[pltpu.VMEM((D, D), jnp.bfloat16),
                        pltpu.SemaphoreType.DMA],
    )(x_cbp, wc, gamma.reshape(C, 1), beta.reshape(C, 1),
      w1t_bf16, b1.reshape(1, D), w2.reshape(1, D), b2.reshape(1, 1))


def reference_forward(x, wc, gamma, beta, w1, b1, w2, b2, *, quantize_w1):
    """Pure-JAX reference mirroring the PyTorch module (train-mode BN).  With
    quantize_w1=True, Linear-1 uses the same bf16-rounded weights/activations as
    the kernel (f32 accumulation on both sides)."""
    B, C = x.shape[:2]
    hp = lax.Precision.HIGHEST
    y = jnp.einsum("oc,nchw->nohw", wc, x, precision=hp)          # 1x1 conv, no bias
    mean = jnp.mean(y, axis=(0, 2, 3), keepdims=True)
    var = jnp.mean((y - mean) ** 2, axis=(0, 2, 3), keepdims=True)
    y = (y - mean) * lax.rsqrt(var + BN_EPS)
    y = y * gamma.reshape(1, C, 1, 1) + beta.reshape(1, C, 1, 1)
    f = jnp.maximum(y.reshape(B, -1), 0.0)
    if quantize_w1:
        f_mm = f.astype(jnp.bfloat16).astype(jnp.float32)
        w1_mm = w1.astype(jnp.bfloat16).astype(jnp.float32)
    else:
        f_mm, w1_mm = f, w1
    h = jnp.maximum(jnp.dot(f_mm, w1_mm.T, precision=hp) + b1, 0.0)
    return jnp.tanh(jnp.dot(h, w2.T, precision=hp) + b2)


if __name__ == "__main__":
    B, C = 2, N_FILTERS
    D = C * H * W

    key = jax.random.PRNGKey(0)
    kx, kc, kg, kb, k1, kb1, k2, kb2 = jax.random.split(key, 8)

    x = jax.random.normal(kx, (B, C, H, W), dtype=jnp.float32)
    # 1x1 conv kernel (C_out, C_in, 1, 1) squeezed to (C_out, C_in)
    wc = jax.random.normal(kc, (C, C), dtype=jnp.float32) * 0.2
    gamma = 1.0 + 0.1 * jax.random.normal(kg, (C,), dtype=jnp.float32)
    beta = 0.1 * jax.random.normal(kb, (C,), dtype=jnp.float32)
    w1 = jax.random.normal(k1, (D, D), dtype=jnp.float32) * (1.0 / jnp.sqrt(D))
    b1 = 0.05 * jax.random.normal(kb1, (D,), dtype=jnp.float32)
    w2 = jax.random.normal(k2, (1, D), dtype=jnp.float32) * (1.0 / jnp.sqrt(D))
    b2 = 0.05 * jax.random.normal(kb2, (1,), dtype=jnp.float32)

    # One-time parameter prep (bf16 + transpose of w1) -- off the per-call path.
    w1t_bf16 = prepare_linear1_weight(w1)

    out = output_forward(x, wc, gamma, beta, w1t_bf16, b1, w2, b2)
    out = jax.block_until_ready(out)
    assert out.shape == (B, 1), out.shape

    # Tight check vs. a reference that uses the same bf16 Linear-1 weights.
    ref_q = reference_forward(x, wc, gamma, beta, w1, b1, w2, b2, quantize_w1=True)
    assert jnp.allclose(out, ref_q, atol=2e-3, rtol=2e-3), (out, ref_q)
    # Loose sanity check vs. the fully-f32 PyTorch-equivalent reference
    # (difference is only the bf16 quantization of the Linear-1 weights).
    ref_f = reference_forward(x, wc, gamma, beta, w1, b1, w2, b2, quantize_w1=False)
    assert jnp.allclose(out, ref_f, atol=5e-2, rtol=5e-2), (out, ref_f)

    print("KERNEL_OK")
</pallas_src>

<mosaic_0001>
module attributes {stable_mosaic.version = 11 : i64} {
  func.func @output_fused_kernel(%arg0: memref<8x128xf32, #tpu.memory_space<vmem>>, %arg1: memref<8x8xf32, #tpu.memory_space<vmem>>, %arg2: memref<8x1xf32, #tpu.memory_space<vmem>>, %arg3: memref<8x1xf32, #tpu.memory_space<vmem>>, %arg4: memref<512x512xbf16, #tpu.memory_space<any>>, %arg5: memref<1x512xf32, #tpu.memory_space<vmem>>, %arg6: memref<1x512xf32, #tpu.memory_space<vmem>>, %arg7: memref<1x1xf32, #tpu.memory_space<vmem>>, %arg8: memref<2x1xf32, #tpu.memory_space<vmem>>, %arg9: memref<512x512xbf16, #tpu.memory_space<vmem>>, %arg10: memref<!tpu.dma_semaphore, #tpu.memory_space<semaphore_mem>>) attributes {dimension_semantics = [], scalar_prefetch = 0 : i64, scratch_operands = 2 : i64, tpu.core_type = #tpu.core_type<tc>} {
    tpu.enqueue_dma source(%arg4 : memref<512x512xbf16, #tpu.memory_space<any>>) target(%arg9 : memref<512x512xbf16, #tpu.memory_space<vmem>>) target_semaphore(%arg10 : memref<!tpu.dma_semaphore, #tpu.memory_space<semaphore_mem>>)
    %c0 = arith.constant 0 : index
    %c0_0 = arith.constant 0 : index
    %0 = vector.load %arg0[%c0, %c0_0] : memref<8x128xf32, #tpu.memory_space<vmem>>, vector<8x128xf32>
    %c0_1 = arith.constant 0 : index
    %c0_2 = arith.constant 0 : index
    %1 = vector.load %arg1[%c0_1, %c0_2] : memref<8x8xf32, #tpu.memory_space<vmem>>, vector<8x8xf32>
    %cst = arith.constant dense<0.000000e+00> : vector<8x128xf32>
    %2 = tpu.matmul %1, %0, %cst {dimension_numbers = #tpu.dot_dimension_numbers<[1], [0], [0], [1], [0, 0, 1, 1], [], []>, precision = #tpu.contract_precision<fp32>} : vector<8x8xf32>, vector<8x128xf32>, vector<8x128xf32> -> vector<8x128xf32>
    %cst_3 = arith.constant dense<0.000000e+00> : vector<8xf32>
    %3 = vector.multi_reduction <add>, %2, %cst_3 [1] : vector<8x128xf32> to vector<8xf32>
    %4 = vector.shape_cast %3 : vector<8xf32> to vector<8x1xf32>
    %cst_4 = arith.constant 1.280000e+02 : f32
    %5 = vector.broadcast %cst_4 : f32 to vector<8x1xf32>
    %6 = arith.divf %4, %5 : vector<8x1xf32>
    %7 = vector.broadcast %6 : vector<8x1xf32> to vector<8x128xf32>
    %8 = arith.subf %2, %7 : vector<8x128xf32>
    %9 = arith.mulf %8, %8 : vector<8x128xf32>
    %cst_5 = arith.constant dense<0.000000e+00> : vector<8xf32>
    %10 = vector.multi_reduction <add>, %9, %cst_5 [1] : vector<8x128xf32> to vector<8xf32>
    %11 = vector.shape_cast %10 : vector<8xf32> to vector<8x1xf32>
    %cst_6 = arith.constant 1.280000e+02 : f32
    %12 = vector.broadcast %cst_6 : f32 to vector<8x1xf32>
    %13 = arith.divf %11, %12 : vector<8x1xf32>
    %c0_7 = arith.constant 0 : index
    %c0_8 = arith.constant 0 : index
    %14 = vector.load %arg2[%c0_7, %c0_8] : memref<8x1xf32, #tpu.memory_space<vmem>>, vector<8x1xf32>
    %cst_9 = arith.constant 9.99999974E-6 : f32
    %15 = vector.broadcast %cst_9 : f32 to vector<8x1xf32>
    %16 = arith.addf %13, %15 : vector<8x1xf32>
    %17 = math.rsqrt %16 : vector<8x1xf32>
    %18 = arith.mulf %14, %17 : vector<8x1xf32>
    %c0_10 = arith.constant 0 : index
    %c0_11 = arith.constant 0 : index
    %19 = vector.load %arg3[%c0_10, %c0_11] : memref<8x1xf32, #tpu.memory_space<vmem>>, vector<8x1xf32>
    %20 = arith.mulf %6, %18 : vector<8x1xf32>
    %21 = arith.subf %19, %20 : vector<8x1xf32>
    %22 = vector.broadcast %18 : vector<8x1xf32> to vector<8x128xf32>
    %23 = arith.mulf %2, %22 : vector<8x128xf32>
    %24 = vector.broadcast %21 : vector<8x1xf32> to vector<8x128xf32>
    %25 = arith.addf %23, %24 : vector<8x128xf32>
    %cst_12 = arith.constant 0.000000e+00 : f32
    %26 = vector.broadcast %cst_12 : f32 to vector<8x128xf32>
    %27 = arith.maximumf %25, %26 : vector<8x128xf32>
    %28 = vector.extract_strided_slice %27 {offsets = [0, 0], sizes = [8, 64], strides = [1, 1]} : vector<8x128xf32> to vector<8x64xf32>
    %29 = vector.extract_strided_slice %28 {offsets = [0, 0], sizes = [1, 64], strides = [1, 1]} : vector<8x64xf32> to vector<1x64xf32>
    %30 = vector.extract_strided_slice %28 {offsets = [1, 0], sizes = [1, 64], strides = [1, 1]} : vector<8x64xf32> to vector<1x64xf32>
    %31 = vector.extract_strided_slice %28 {offsets = [2, 0], sizes = [1, 64], strides = [1, 1]} : vector<8x64xf32> to vector<1x64xf32>
    %32 = vector.extract_strided_slice %28 {offsets = [3, 0], sizes = [1, 64], strides = [1, 1]} : vector<8x64xf32> to vector<1x64xf32>
    %33 = vector.extract_strided_slice %28 {offsets = [4, 0], sizes = [1, 64], strides = [1, 1]} : vector<8x64xf32> to vector<1x64xf32>
    %34 = vector.extract_strided_slice %28 {offsets = [5, 0], sizes = [1, 64], strides = [1, 1]} : vector<8x64xf32> to vector<1x64xf32>
    %35 = vector.extract_strided_slice %28 {offsets = [6, 0], sizes = [1, 64], strides = [1, 1]} : vector<8x64xf32> to vector<1x64xf32>
    %36 = vector.extract_strided_slice %28 {offsets = [7, 0], sizes = [1, 64], strides = [1, 1]} : vector<8x64xf32> to vector<1x64xf32>
    %37 = tpu.concatenate %29, %30, %31, %32, %33, %34, %35, %36 in 1 : vector<1x64xf32>, vector<1x64xf32>, vector<1x64xf32>, vector<1x64xf32>, vector<1x64xf32>, vector<1x64xf32>, vector<1x64xf32>, vector<1x64xf32> -> vector<1x512xf32>
    %38 = vector.extract_strided_slice %27 {offsets = [0, 64], sizes = [8, 64], strides = [1, 1]} : vector<8x128xf32> to vector<8x64xf32>
    %39 = vector.extract_strided_slice %38 {offsets = [0, 0], sizes = [1, 64], strides = [1, 1]} : vector<8x64xf32> to vector<1x64xf32>
    %40 = vector.extract_strided_slice %38 {offsets = [1, 0], sizes = [1, 64], strides = [1, 1]} : vector<8x64xf32> to vector<1x64xf32>
    %41 = vector.extract_strided_slice %38 {offsets = [2, 0], sizes = [1, 64], strides = [1, 1]} : vector<8x64xf32> to vector<1x64xf32>
    %42 = vector.extract_strided_slice %38 {offsets = [3, 0], sizes = [1, 64], strides = [1, 1]} : vector<8x64xf32> to vector<1x64xf32>
    %43 = vector.extract_strided_slice %38 {offsets = [4, 0], sizes = [1, 64], strides = [1, 1]} : vector<8x64xf32> to vector<1x64xf32>
    %44 = vector.extract_strided_slice %38 {offsets = [5, 0], sizes = [1, 64], strides = [1, 1]} : vector<8x64xf32> to vector<1x64xf32>
    %45 = vector.extract_strided_slice %38 {offsets = [6, 0], sizes = [1, 64], strides = [1, 1]} : vector<8x64xf32> to vector<1x64xf32>
    %46 = vector.extract_strided_slice %38 {offsets = [7, 0], sizes = [1, 64], strides = [1, 1]} : vector<8x64xf32> to vector<1x64xf32>
    %47 = tpu.concatenate %39, %40, %41, %42, %43, %44, %45, %46 in 1 : vector<1x64xf32>, vector<1x64xf32>, vector<1x64xf32>, vector<1x64xf32>, vector<1x64xf32>, vector<1x64xf32>, vector<1x64xf32>, vector<1x64xf32> -> vector<1x512xf32>
    %48 = tpu.concatenate %37, %47 in 0 : vector<1x512xf32>, vector<1x512xf32> -> vector<2x512xf32>
    tpu.wait_dma2 semaphore(%arg10 : memref<!tpu.dma_semaphore, #tpu.memory_space<semaphore_mem>>) src(%arg4 : memref<512x512xbf16, #tpu.memory_space<any>>) dst(%arg9 : memref<512x512xbf16, #tpu.memory_space<vmem>>)
    %49 = arith.truncf %48 : vector<2x512xf32> to vector<2x512xbf16>
    %c0_13 = arith.constant 0 : index
    %c0_14 = arith.constant 0 : index
    %50 = vector.load %arg9[%c0_13, %c0_14] : memref<512x512xbf16, #tpu.memory_space<vmem>>, vector<512x512xbf16>
    %cst_15 = arith.constant dense<0.000000e+00> : vector<2x512xf32>
    %51 = tpu.matmul %49, %50, %cst_15 {dimension_numbers = #tpu.dot_dimension_numbers<[1], [0], [0], [1], [0, 0, 1, 1], [], []>} : vector<2x512xbf16>, vector<512x512xbf16>, vector<2x512xf32> -> vector<2x512xf32>
    %c0_16 = arith.constant 0 : index
    %c0_17 = arith.constant 0 : index
    %52 = vector.load %arg5[%c0_16, %c0_17] : memref<1x512xf32, #tpu.memory_space<vmem>>, vector<1x512xf32>
    %53 = vector.broadcast %52 : vector<1x512xf32> to vector<2x512xf32>
    %54 = arith.addf %51, %53 : vector<2x512xf32>
    %cst_18 = arith.constant 0.000000e+00 : f32
    %55 = vector.broadcast %cst_18 : f32 to vector<2x512xf32>
    %56 = arith.maximumf %54, %55 : vector<2x512xf32>
    %c0_19 = arith.constant 0 : index
    %c0_20 = arith.constant 0 : index
    %57 = vector.load %arg6[%c0_19, %c0_20] : memref<1x512xf32, #tpu.memory_space<vmem>>, vector<1x512xf32>
    %58 = vector.broadcast %57 : vector<1x512xf32> to vector<2x512xf32>
    %59 = arith.mulf %56, %58 : vector<2x512xf32>
    %cst_21 = arith.constant dense<0.000000e+00> : vector<2xf32>
    %60 = vector.multi_reduction <add>, %59, %cst_21 [1] : vector<2x512xf32> to vector<2xf32>
    %61 = vector.shape_cast %60 : vector<2xf32> to vector<2x1xf32>
    %c0_22 = arith.constant 0 : index
    %c0_23 = arith.constant 0 : index
    %62 = vector.load %arg7[%c0_22, %c0_23] : memref<1x1xf32, #tpu.memory_space<vmem>>, vector<1x1xf32>
    %63 = vector.broadcast %62 : vector<1x1xf32> to vector<2x1xf32>
    %64 = arith.addf %61, %63 : vector<2x1xf32>
    %65 = math.tanh %64 : vector<2x1xf32>
    %c0_24 = arith.constant 0 : index
    %c0_25 = arith.constant 0 : index
    %66 = vector.load %arg8[%c0_24, %c0_25] : memref<2x1xf32, #tpu.memory_space<vmem>>, vector<2x1xf32>
    tpu.vector_store %arg8[%c0_24, %c0_25], %65 {strides = array<i32>} : memref<2x1xf32, #tpu.memory_space<vmem>>, vector<2x1xf32>,
    return
  }
}

</mosaic_0001>

<llo_original>
// kernel: output_forward.1
$region0: #{output_forward.1}
  #allocation0 [shape = 'u32[]', space=smem, size = 0x4, offset = 0x4, fixed_abs, tag = 'smem constant byte address 0x4 - core index']
  #allocation1 [shape = 'u32[144,128]{1,0:T(1,128)}', space=vmem, size = 0x12000, scoped, tag = 'internal scratch']
  #allocation2 [shape = 'bf16[512,512]{1,0:T(16,128)(2,1)}', space=vmem, size = 0x80000, scoped, tag = 'scratch operand']
  #allocation3 [shape = 's32[1]{0}', space=sflag, size = 0x4, scoped, tag = 'scratch operand']
  #allocation4 [shape = 'f32[1,1]{1,0:T(1,128)S(1)}', space=vmem, size = 0x200, scoped, tag = 'scoped memory for output_forward.1']
  #allocation5 [shape = 's32[]', space=sflag, size = 0x4, offset = 0, fixed_abs, tag = 'sflag constant byte address 0x0 - dummy sync flag']
  %s0 = inlined_call_operand.vmem [shape: f32[8,128], index: 0, kind: input, shape index: {}]
  %s1 = inlined_call_operand.vmem [shape: f32[8,8], index: 1, kind: input, shape index: {}]
  %s2 = inlined_call_operand.vmem [shape: f32[8,1], index: 2, kind: input, shape index: {}]
  %s3 = inlined_call_operand.vmem [shape: f32[8,1], index: 3, kind: input, shape index: {}]
  %s4 = inlined_call_operand.hbm [shape: bf16[512,512], index: 4, kind: input, shape index: {}]
  %s5 = inlined_call_operand.vmem [shape: f32[1,512], index: 5, kind: input, shape index: {}]
  %s6 = inlined_call_operand.vmem [shape: f32[1,512], index: 6, kind: input, shape index: {}]
  %s7 = inlined_call_operand.<no memory space> [shape: f32[1,1], index: 7, kind: input, shape index: {}]
  %s8 = inlined_call_operand.vmem [shape: f32[2,1], index: 8, kind: output, shape index: {}]
  %s9 = sld [smem:[#allocation0]]
  $region38: #{output_forward.1} parent=0
    _
  %s11 = ssub.s32 1, %s9
  %s12 = scalar_select 0, %s11, %s9
  %v13 = vstv %s7
  %14 = vst [vmem:[#allocation4] sm:$0x1] %v13
  $region1: #{output_forward.1} parent=0
    #allocation6 [shape = 'u32[9]{0}', space=smem, size = 0x24, scoped, tag = 'DMA stride descriptor']
    // Predicated region
    $region2: #{output_forward.1} parent=1 // pred_check
      _
    $region3: #{output_forward.1} parent=1 // pred_check_branch
      %16 = sbr.rel (0) target = $region5
    $region4: #{output_forward.1} parent=1 // pred_region
      _
    $region5: #{output_forward.1} parent=1 // pred_fallthru
      _
    // Predicated region
    $region6: #{output_forward.1} parent=1 // pred_check
      _
    $region7: #{output_forward.1} parent=1 // pred_check_branch
      %18 = sbr.rel (0) target = $region9
    $region8: #{output_forward.1} parent=1 // pred_region
      _
    $region9: #{output_forward.1} parent=1 // pred_fallthru
      _
    // Predicated region
    $region10: #{output_forward.1} parent=1 // pred_check
      _
    $region11: #{output_forward.1} parent=1 // pred_check_branch
      %20 = sbr.rel (0) target = $region13
    $region12: #{output_forward.1} parent=1 // pred_region
      _
    $region13: #{output_forward.1} parent=1 // pred_fallthru
      _
    // Predicated region
    $region14: #{output_forward.1} parent=1 // pred_check
      _
    $region15: #{output_forward.1} parent=1 // pred_check_branch
      %22 = sbr.rel (0) target = $region17
    $region16: #{output_forward.1} parent=1 // pred_region
      _
    $region17: #{output_forward.1} parent=1 // pred_fallthru
      _
    // Predicated region
    $region18: #{output_forward.1} parent=1 // pred_check
      _
    $region19: #{output_forward.1} parent=1 // pred_check_branch
      %24 = sbr.rel (0) target = $region21
    $region20: #{output_forward.1} parent=1 // pred_region
      _
    $region21: #{output_forward.1} parent=1 // pred_fallthru
      _
    // Predicated region
    $region22: #{output_forward.1} parent=1 // pred_check
      _
    $region23: #{output_forward.1} parent=1 // pred_check_branch
      %26 = sbr.rel (0) target = $region25
    $region24: #{output_forward.1} parent=1 // pred_region
      _
    $region25: #{output_forward.1} parent=1 // pred_fallthru
      _
    // Predicated region
    $region26: #{output_forward.1} parent=1 // pred_check
      _
    $region27: #{output_forward.1} parent=1 // pred_check_branch
      %28 = sbr.rel (0) target = $region29
    $region28: #{output_forward.1} parent=1 // pred_region
      _
    $region29: #{output_forward.1} parent=1 // pred_fallthru
      _
    %s30 = sshll.u32 1, 14
    %s31 = sxor.u32 4294967295, %s30
    %s33 = sld [smem:[#allocation0]]
    %s34 = sadd.s32 2, %s33
    %s36 = sshll.u32 7, 26
    %s37 = sxor.u32 4294967295, %s36
    %s38 = sand.u32 0, %s37
    %s39 = sshll.u32 %s34, 26
    %s40 = sor.u32 %s38, %s39
    %s41 = sshll.u32 [#allocation2], 4
    %s42 = int_to_ptr.vmem [resolvable:$true] %s41
    %45 = sst [smem:[#allocation6]] 512
    %s46 = scalar_lea.smem [#allocation6], 1
    %47 = sst [smem:[%s46]] 512
    %s48 = scalar_lea.smem [#allocation6], 2
    %49 = sst [smem:[%s48]] 4
    %s50 = scalar_lea.smem [#allocation6], 3
    %51 = sst [smem:[%s50]] 64
    %s52 = scalar_lea.smem [#allocation6], 4
    %53 = sst [smem:[%s52]] 128
    %s54 = scalar_lea.smem [#allocation6], 5
    %55 = sst [smem:[%s54]] 2
    %s56 = scalar_lea.smem [#allocation6], 6
    %57 = sst [smem:[%s56]] 256
    %s58 = scalar_lea.smem [#allocation6], 7
    %59 = sst [smem:[%s58]] 64
    %s60 = scalar_lea.smem [#allocation6], 8
    %61 = sst [smem:[%s60]] 4
    %63 = dma.general %s4, 16384, %s42, [#allocation3], [#allocation5], [#allocation6], %s40, 0
    %v64 = vld [vmem:[%s0] sm:$0xff]
    %v65 = vld [vmem:[%s1] sm:$0xff]
    %vm66 = vcmask 64512
    %v68 = vsel %vm66, %v65, 0
    %70 = vmatprep.subr.mxu0 0.0
    %v71 = vand.u32 %v64, 4294901760
    %72 = vmatpush1.msra.mxu0 %v71
    %73 = vmatprep.subr.mxu0 0.0
    %74 = vmatpush1.msra.mxu0 0.0
    %75 = vmatprep.subr.mxu0 0.0
    %76 = vmatpush1.msra.mxu0 0.0
    %77 = vmatprep.subr.mxu0 0.0
    %78 = vmatpush1.msra.mxu0 0.0
    %79 = vmatprep.subr.mxu0 0.0
    %80 = vmatpush1.msra.mxu0 0.0
    %81 = vmatprep.subr.mxu0 0.0
    %82 = vmatpush1.msra.mxu0 0.0
    %83 = vmatprep.subr.mxu0 0.0
    %84 = vmatpush1.msra.mxu0 0.0
    %85 = vmatprep.subr.mxu0 0.0
    %86 = vmatpush1.msra.mxu0 0.0
    %87 = vmatprep.subr.mxu0 0.0
    %88 = vmatpush1.msra.mxu0 0.0
    %89 = vmatprep.subr.mxu0 0.0
    %90 = vmatpush1.msra.mxu0 0.0
    %91 = vmatprep.subr.mxu0 0.0
    %92 = vmatpush1.msra.mxu0 0.0
    %93 = vmatprep.subr.mxu0 0.0
    %94 = vmatpush1.msra.mxu0 0.0
    %95 = vmatprep.subr.mxu0 0.0
    %96 = vmatpush1.msra.mxu0 0.0
    %97 = vmatprep.subr.mxu0 0.0
    %98 = vmatpush1.msra.mxu0 0.0
    %99 = vmatprep.subr.mxu0 0.0
    %100 = vmatpush1.msra.mxu0 0.0
    %101 = vmatprep.subr.mxu0 0.0
    %102 = vmatpush1.msra.mxu0 0.0
    %103 = vmatprep.subr.mxu0 0.0
    %104 = vmatpush1.msra.mxu0 0.0
    %105 = vmatprep.subr.mxu0 0.0
    %106 = vmatpush1.msra.mxu0 0.0
    %107 = vmatprep.subr.mxu0 0.0
    %108 = vmatpush1.msra.mxu0 0.0
    %109 = vmatprep.subr.mxu0 0.0
    %110 = vmatpush1.msra.mxu0 0.0
    %111 = vmatprep.subr.mxu0 0.0
    %112 = vmatpush1.msra.mxu0 0.0
    %113 = vmatprep.subr.mxu0 0.0
    %114 = vmatpush1.msra.mxu0 0.0
    %115 = vmatprep.subr.mxu0 0.0
    %116 = vmatpush1.msra.mxu0 0.0
    %117 = vmatprep.subr.mxu0 0.0
    %118 = vmatpush1.msra.mxu0 0.0
    %119 = vmatprep.subr.mxu0 0.0
    %120 = vmatpush1.msra.mxu0 0.0
    %121 = vmatprep.subr.mxu0 0.0
    %122 = vmatpush1.msra.mxu0 0.0
    %123 = vmatprep.subr.mxu0 0.0
    %124 = vmatpush1.msra.mxu0 0.0
    %125 = vmatprep.subr.mxu0 0.0
    %126 = vmatpush1.msra.mxu0 0.0
    %127 = vmatprep.subr.mxu0 0.0
    %128 = vmatpush1.msra.mxu0 0.0
    %129 = vmatprep.subr.mxu0 0.0
    %130 = vmatpush1.msra.mxu0 0.0
    %131 = vmatprep.subr.mxu0 0.0
    %132 = vmatpush1.msra.mxu0 0.0
    %133 = vmatprep.subr.mxu0 0.0
    %134 = vmatpush1.msra.mxu0 0.0
    %135 = vmatprep.mubr.f32.mxu0 0.0
    %v136 = vand.u32 %v68, 4294901760
    %v137 = vsub.f32 %v68, %v136
    %v138 = vand.u32 %v137, 4294901760
    %v139 = vsub.f32 %v137, %v138
    %v140 = vand.u32 %v139, 4294901760
    %141 = vmatmul.mubr.f32.gmra.mrb[0].mxu0 %v140
    %v142 = vpop.f32.mrb[0].mxu0
    %v143 = vadd.f32 0.0, %v142
    %v144 = vpop.f32.mrb[0].mxu0
    %145 = vdwg.mxu0
    %146 = vmatprep.subr.mxu0 0.0
    %v147 = vand.u32 %v64, 4294901760
    %v148 = vsub.f32 %v64, %v147
    %v149 = vand.u32 %v148, 4294901760
    %v150 = vsub.f32 %v148, %v149
    %v151 = vand.u32 %v150, 4294901760
    %152 = vmatpush1.msra.mxu0 %v151
    %153 = vmatprep.subr.mxu0 0.0
    %154 = vmatpush1.msra.mxu0 0.0
    %155 = vmatprep.subr.mxu0 0.0
    %156 = vmatpush1.msra.mxu0 0.0
    %157 = vmatprep.subr.mxu0 0.0
    %158 = vmatpush1.msra.mxu0 0.0
    %159 = vmatprep.subr.mxu0 0.0
    %160 = vmatpush1.msra.mxu0 0.0
    %161 = vmatprep.subr.mxu0 0.0
    %162 = vmatpush1.msra.mxu0 0.0
    %163 = vmatprep.subr.mxu0 0.0
    %164 = vmatpush1.msra.mxu0 0.0
    %165 = vmatprep.subr.mxu0 0.0
    %166 = vmatpush1.msra.mxu0 0.0
    %167 = vmatprep.subr.mxu0 0.0
    %168 = vmatpush1.msra.mxu0 0.0
    %169 = vmatprep.subr.mxu0 0.0
    %170 = vmatpush1.msra.mxu0 0.0
    %171 = vmatprep.subr.mxu0 0.0
    %172 = vmatpush1.msra.mxu0 0.0
    %173 = vmatprep.subr.mxu0 0.0
    %174 = vmatpush1.msra.mxu0 0.0
    %175 = vmatprep.subr.mxu0 0.0
    %176 = vmatpush1.msra.mxu0 0.0
    %177 = vmatprep.subr.mxu0 0.0
    %178 = vmatpush1.msra.mxu0 0.0
    %179 = vmatprep.subr.mxu0 0.0
    %180 = vmatpush1.msra.mxu0 0.0
    %181 = vmatprep.subr.mxu0 0.0
    %182 = vmatpush1.msra.mxu0 0.0
    %183 = vmatprep.subr.mxu0 0.0
    %184 = vmatpush1.msra.mxu0 0.0
    %185 = vmatprep.subr.mxu0 0.0
    %186 = vmatpush1.msra.mxu0 0.0
    %187 = vmatprep.subr.mxu0 0.0
    %188 = vmatpush1.msra.mxu0 0.0
    %189 = vmatprep.subr.mxu0 0.0
    %190 = vmatpush1.msra.mxu0 0.0
    %191 = vmatprep.subr.mxu0 0.0
    %192 = vmatpush1.msra.mxu0 0.0
    %193 = vmatprep.subr.mxu0 0.0
    %194 = vmatpush1.msra.mxu0 0.0
    %195 = vmatprep.subr.mxu0 0.0
    %196 = vmatpush1.msra.mxu0 0.0
    %197 = vmatprep.subr.mxu0 0.0
    %198 = vmatpush1.msra.mxu0 0.0
    %199 = vmatprep.subr.mxu0 0.0
    %200 = vmatpush1.msra.mxu0 0.0
    %201 = vmatprep.subr.mxu0 0.0
    %202 = vmatpush1.msra.mxu0 0.0
    %203 = vmatprep.subr.mxu0 0.0
    %204 = vmatpush1.msra.mxu0 0.0
    %205 = vmatprep.subr.mxu0 0.0
    %206 = vmatpush1.msra.mxu0 0.0
    %207 = vmatprep.subr.mxu0 0.0
    %208 = vmatpush1.msra.mxu0 0.0
    %209 = vmatprep.subr.mxu0 0.0
    %210 = vmatpush1.msra.mxu0 0.0
    %211 = vmatprep.subr.mxu0 0.0
    %212 = vmatpush1.msra.mxu0 0.0
    %213 = vmatprep.subr.mxu0 0.0
    %214 = vmatpush1.msra.mxu0 0.0
    %215 = vmatprep.mubr.f32.mxu0 0.0
    %v216 = vand.u32 %v68, 4294901760
    %217 = vmatmul.mubr.f32.gmra.mrb[0].mxu0 %v216
    %v218 = vpop.f32.mrb[0].mxu0
    %v219 = vadd.f32 %v143, %v218
    %v220 = vpop.f32.mrb[0].mxu0
    %221 = vdwg.mxu0
    %222 = vmatprep.subr.mxu0 0.0
    %v223 = vand.u32 %v64, 4294901760
    %v224 = vsub.f32 %v64, %v223
    %225 = vmatpush1.msra.mxu0 %v224
    %226 = vmatprep.subr.mxu0 0.0
    %227 = vmatpush1.msra.mxu0 0.0
    %228 = vmatprep.subr.mxu0 0.0
    %229 = vmatpush1.msra.mxu0 0.0
    %230 = vmatprep.subr.mxu0 0.0
    %231 = vmatpush1.msra.mxu0 0.0
    %232 = vmatprep.subr.mxu0 0.0
    %233 = vmatpush1.msra.mxu0 0.0
    %234 = vmatprep.subr.mxu0 0.0
    %235 = vmatpush1.msra.mxu0 0.0
    %236 = vmatprep.subr.mxu0 0.0
    %237 = vmatpush1.msra.mxu0 0.0
    %238 = vmatprep.subr.mxu0 0.0
    %239 = vmatpush1.msra.mxu0 0.0
    %240 = vmatprep.subr.mxu0 0.0
    %241 = vmatpush1.msra.mxu0 0.0
    %242 = vmatprep.subr.mxu0 0.0
    %243 = vmatpush1.msra.mxu0 0.0
    %244 = vmatprep.subr.mxu0 0.0
    %245 = vmatpush1.msra.mxu0 0.0
    %246 = vmatprep.subr.mxu0 0.0
    %247 = vmatpush1.msra.mxu0 0.0
    %248 = vmatprep.subr.mxu0 0.0
    %249 = vmatpush1.msra.mxu0 0.0
    %250 = vmatprep.subr.mxu0 0.0
    %251 = vmatpush1.msra.mxu0 0.0
    %252 = vmatprep.subr.mxu0 0.0
    %253 = vmatpush1.msra.mxu0 0.0
    %254 = vmatprep.subr.mxu0 0.0
    %255 = vmatpush1.msra.mxu0 0.0
    %256 = vmatprep.subr.mxu0 0.0
    %257 = vmatpush1.msra.mxu0 0.0
    %258 = vmatprep.subr.mxu0 0.0
    %259 = vmatpush1.msra.mxu0 0.0
    %260 = vmatprep.subr.mxu0 0.0
    %261 = vmatpush1.msra.mxu0 0.0
    %262 = vmatprep.subr.mxu0 0.0
    %263 = vmatpush1.msra.mxu0 0.0
    %264 = vmatprep.subr.mxu0 0.0
    %265 = vmatpush1.msra.mxu0 0.0
    %266 = vmatprep.subr.mxu0 0.0
    %267 = vmatpush1.msra.mxu0 0.0
    %268 = vmatprep.subr.mxu0 0.0
    %269 = vmatpush1.msra.mxu0 0.0
    %270 = vmatprep.subr.mxu0 0.0
    %271 = vmatpush1.msra.mxu0 0.0
    %272 = vmatprep.subr.mxu0 0.0
    %273 = vmatpush1.msra.mxu0 0.0
    %274 = vmatprep.subr.mxu0 0.0
    %275 = vmatpush1.msra.mxu0 0.0
    %276 = vmatprep.subr.mxu0 0.0
    %277 = vmatpush1.msra.mxu0 0.0
    %278 = vmatprep.subr.mxu0 0.0
    %279 = vmatpush1.msra.mxu0 0.0
    %280 = vmatprep.subr.mxu0 0.0
    %281 = vmatpush1.msra.mxu0 0.0
    %282 = vmatprep.subr.mxu0 0.0
    %283 = vmatpush1.msra.mxu0 0.0
    %284 = vmatprep.subr.mxu0 0.0
    %285 = vmatpush1.msra.mxu0 0.0
    %286 = vmatprep.subr.mxu0 0.0
    %287 = vmatpush1.msra.mxu0 0.0
    %288 = vmatprep.mubr.f32.mxu0 0.0
    %v289 = vand.u32 %v68, 4294901760
    %v290 = vsub.f32 %v68, %v289
    %291 = vmatmul.mubr.f32.gmra.mrb[0].mxu0 %v290
    %v292 = vpop.f32.mrb[0].mxu0
    %v293 = vadd.f32 %v219, %v292
    %v294 = vpop.f32.mrb[0].mxu0
    %295 = vdwg.mxu0
    %296 = vmatprep.subr.mxu0 0.0
    %v297 = vand.u32 %v64, 4294901760
    %298 = vmatpush1.msra.mxu0 %v297
    %299 = vmatprep.subr.mxu0 0.0
    %300 = vmatpush1.msra.mxu0 0.0
    %301 = vmatprep.subr.mxu0 0.0
    %302 = vmatpush1.msra.mxu0 0.0
    %303 = vmatprep.subr.mxu0 0.0
    %304 = vmatpush1.msra.mxu0 0.0
    %305 = vmatprep.subr.mxu0 0.0
    %306 = vmatpush1.msra.mxu0 0.0
    %307 = vmatprep.subr.mxu0 0.0
    %308 = vmatpush1.msra.mxu0 0.0
    %309 = vmatprep.subr.mxu0 0.0
    %310 = vmatpush1.msra.mxu0 0.0
    %311 = vmatprep.subr.mxu0 0.0
    %312 = vmatpush1.msra.mxu0 0.0
    %313 = vmatprep.subr.mxu0 0.0
    %314 = vmatpush1.msra.mxu0 0.0
    %315 = vmatprep.subr.mxu0 0.0
    %316 = vmatpush1.msra.mxu0 0.0
    %317 = vmatprep.subr.mxu0 0.0
    %318 = vmatpush1.msra.mxu0 0.0
    %319 = vmatprep.subr.mxu0 0.0
    %320 = vmatpush1.msra.mxu0 0.0
    %321 = vmatprep.subr.mxu0 0.0
    %322 = vmatpush1.msra.mxu0 0.0
    %323 = vmatprep.subr.mxu0 0.0
    %324 = vmatpush1.msra.mxu0 0.0
    %325 = vmatprep.subr.mxu0 0.0
    %326 = vmatpush1.msra.mxu0 0.0
    %327 = vmatprep.subr.mxu0 0.0
    %328 = vmatpush1.msra.mxu0 0.0
    %329 = vmatprep.subr.mxu0 0.0
    %330 = vmatpush1.msra.mxu0 0.0
    %331 = vmatprep.subr.mxu0 0.0
    %332 = vmatpush1.msra.mxu0 0.0
    %333 = vmatprep.subr.mxu0 0.0
    %334 = vmatpush1.msra.mxu0 0.0
    %335 = vmatprep.subr.mxu0 0.0
    %336 = vmatpush1.msra.mxu0 0.0
    %337 = vmatprep.subr.mxu0 0.0
    %338 = vmatpush1.msra.mxu0 0.0
    %339 = vmatprep.subr.mxu0 0.0
    %340 = vmatpush1.msra.mxu0 0.0
    %341 = vmatprep.subr.mxu0 0.0
    %342 = vmatpush1.msra.mxu0 0.0
    %343 = vmatprep.subr.mxu0 0.0
    %344 = vmatpush1.msra.mxu0 0.0
    %345 = vmatprep.subr.mxu0 0.0
    %346 = vmatpush1.msra.mxu0 0.0
    %347 = vmatprep.subr.mxu0 0.0
    %348 = vmatpush1.msra.mxu0 0.0
    %349 = vmatprep.subr.mxu0 0.0
    %350 = vmatpush1.msra.mxu0 0.0
    %351 = vmatprep.subr.mxu0 0.0
    %352 = vmatpush1.msra.mxu0 0.0
    %353 = vmatprep.subr.mxu0 0.0
    %354 = vmatpush1.msra.mxu0 0.0
    %355 = vmatprep.subr.mxu0 0.0
    %356 = vmatpush1.msra.mxu0 0.0
    %357 = vmatprep.subr.mxu0 0.0
    %358 = vmatpush1.msra.mxu0 0.0
    %359 = vmatprep.subr.mxu0 0.0
    %360 = vmatpush1.msra.mxu0 0.0
    %361 = vmatprep.mubr.f32.mxu0 0.0
    %v362 = vand.u32 %v68, 4294901760
    %v363 = vsub.f32 %v68, %v362
    %v364 = vand.u32 %v363, 4294901760
    %365 = vmatmul.mubr.f32.gmra.mrb[0].mxu0 %v364
    %v366 = vpop.f32.mrb[0].mxu0
    %v367 = vadd.f32 %v293, %v366
    %v368 = vpop.f32.mrb[0].mxu0
    %369 = vdwg.mxu0
    %370 = vmatprep.subr.mxu0 0.0
    %v371 = vand.u32 %v64, 4294901760
    %v372 = vsub.f32 %v64, %v371
    %v373 = vand.u32 %v372, 4294901760
    %374 = vmatpush1.msra.mxu0 %v373
    %375 = vmatprep.subr.mxu0 0.0
    %376 = vmatpush1.msra.mxu0 0.0
    %377 = vmatprep.subr.mxu0 0.0
    %378 = vmatpush1.msra.mxu0 0.0
    %379 = vmatprep.subr.mxu0 0.0
    %380 = vmatpush1.msra.mxu0 0.0
    %381 = vmatprep.subr.mxu0 0.0
    %382 = vmatpush1.msra.mxu0 0.0
    %383 = vmatprep.subr.mxu0 0.0
    %384 = vmatpush1.msra.mxu0 0.0
    %385 = vmatprep.subr.mxu0 0.0
    %386 = vmatpush1.msra.mxu0 0.0
    %387 = vmatprep.subr.mxu0 0.0
    %388 = vmatpush1.msra.mxu0 0.0
    %389 = vmatprep.subr.mxu0 0.0
    %390 = vmatpush1.msra.mxu0 0.0
    %391 = vmatprep.subr.mxu0 0.0
    %392 = vmatpush1.msra.mxu0 0.0
    %393 = vmatprep.subr.mxu0 0.0
    %394 = vmatpush1.msra.mxu0 0.0
    %395 = vmatprep.subr.mxu0 0.0
    %396 = vmatpush1.msra.mxu0 0.0
    %397 = vmatprep.subr.mxu0 0.0
    %398 = vmatpush1.msra.mxu0 0.0
    %399 = vmatprep.subr.mxu0 0.0
    %400 = vmatpush1.msra.mxu0 0.0
    %401 = vmatprep.subr.mxu0 0.0
    %402 = vmatpush1.msra.mxu0 0.0
    %403 = vmatprep.subr.mxu0 0.0
    %404 = vmatpush1.msra.mxu0 0.0
    %405 = vmatprep.subr.mxu0 0.0
    %406 = vmatpush1.msra.mxu0 0.0
    %407 = vmatprep.subr.mxu0 0.0
    %408 = vmatpush1.msra.mxu0 0.0
    %409 = vmatprep.subr.mxu0 0.0
    %410 = vmatpush1.msra.mxu0 0.0
    %411 = vmatprep.subr.mxu0 0.0
    %412 = vmatpush1.msra.mxu0 0.0
    %413 = vmatprep.subr.mxu0 0.0
    %414 = vmatpush1.msra.mxu0 0.0
    %415 = vmatprep.subr.mxu0 0.0
    %416 = vmatpush1.msra.mxu0 0.0
    %417 = vmatprep.subr.mxu0 0.0
    %418 = vmatpush1.msra.mxu0 0.0
    %419 = vmatprep.subr.mxu0 0.0
    %420 = vmatpush1.msra.mxu0 0.0
    %421 = vmatprep.subr.mxu0 0.0
    %422 = vmatpush1.msra.mxu0 0.0
    %423 = vmatprep.subr.mxu0 0.0
    %424 = vmatpush1.msra.mxu0 0.0
    %425 = vmatprep.subr.mxu0 0.0
    %426 = vmatpush1.msra.mxu0 0.0
    %427 = vmatprep.subr.mxu0 0.0
    %428 = vmatpush1.msra.mxu0 0.0
    %429 = vmatprep.subr.mxu0 0.0
    %430 = vmatpush1.msra.mxu0 0.0
    %431 = vmatprep.subr.mxu0 0.0
    %432 = vmatpush1.msra.mxu0 0.0
    %433 = vmatprep.subr.mxu0 0.0
    %434 = vmatpush1.msra.mxu0 0.0
    %435 = vmatprep.subr.mxu0 0.0
    %436 = vmatpush1.msra.mxu0 0.0
    %437 = vmatprep.mubr.f32.mxu0 0.0
    %v438 = vand.u32 %v68, 4294901760
    %439 = vmatmul.mubr.f32.gmra.mrb[0].mxu0 %v438
    %v440 = vpop.f32.mrb[0].mxu0
    %v441 = vadd.f32 %v367, %v440
    %v442 = vpop.f32.mrb[0].mxu0
    %443 = vdwg.mxu0
    %444 = vmatprep.subr.mxu0 0.0
    %v445 = vand.u32 %v64, 4294901760
    %446 = vmatpush1.msra.mxu0 %v445
    %447 = vmatprep.subr.mxu0 0.0
    %448 = vmatpush1.msra.mxu0 0.0
    %449 = vmatprep.subr.mxu0 0.0
    %450 = vmatpush1.msra.mxu0 0.0
    %451 = vmatprep.subr.mxu0 0.0
    %452 = vmatpush1.msra.mxu0 0.0
    %453 = vmatprep.subr.mxu0 0.0
    %454 = vmatpush1.msra.mxu0 0.0
    %455 = vmatprep.subr.mxu0 0.0
    %456 = vmatpush1.msra.mxu0 0.0
    %457 = vmatprep.subr.mxu0 0.0
    %458 = vmatpush1.msra.mxu0 0.0
    %459 = vmatprep.subr.mxu0 0.0
    %460 = vmatpush1.msra.mxu0 0.0
    %461 = vmatprep.subr.mxu0 0.0
    %462 = vmatpush1.msra.mxu0 0.0
    %463 = vmatprep.subr.mxu0 0.0
    %464 = vmatpush1.msra.mxu0 0.0
    %465 = vmatprep.subr.mxu0 0.0
    %466 = vmatpush1.msra.mxu0 0.0
    %467 = vmatprep.subr.mxu0 0.0
    %468 = vmatpush1.msra.mxu0 0.0
    %469 = vmatprep.subr.mxu0 0.0
    %470 = vmatpush1.msra.mxu0 0.0
    %471 = vmatprep.subr.mxu0 0.0
    %472 = vmatpush1.msra.mxu0 0.0
    %473 = vmatprep.subr.mxu0 0.0
    %474 = vmatpush1.msra.mxu0 0.0
    %475 = vmatprep.subr.mxu0 0.0
    %476 = vmatpush1.msra.mxu0 0.0
    %477 = vmatprep.subr.mxu0 0.0
    %478 = vmatpush1.msra.mxu0 0.0
    %479 = vmatprep.subr.mxu0 0.0
    %480 = vmatpush1.msra.mxu0 0.0
    %481 = vmatprep.subr.mxu0 0.0
    %482 = vmatpush1.msra.mxu0 0.0
    %483 = vmatprep.subr.mxu0 0.0
    %484 = vmatpush1.msra.mxu0 0.0
    %485 = vmatprep.subr.mxu0 0.0
    %486 = vmatpush1.msra.mxu0 0.0
    %487 = vmatprep.subr.mxu0 0.0
    %488 = vmatpush1.msra.mxu0 0.0
    %489 = vmatprep.subr.mxu0 0.0
    %490 = vmatpush1.msra.mxu0 0.0
    %491 = vmatprep.subr.mxu0 0.0
    %492 = vmatpush1.msra.mxu0 0.0
    %493 = vmatprep.subr.mxu0 0.0
    %494 = vmatpush1.msra.mxu0 0.0
    %495 = vmatprep.subr.mxu0 0.0
    %496 = vmatpush1.msra.mxu0 0.0
    %497 = vmatprep.subr.mxu0 0.0
    %498 = vmatpush1.msra.mxu0 0.0
    %499 = vmatprep.subr.mxu0 0.0
    %500 = vmatpush1.msra.mxu0 0.0
    %501 = vmatprep.subr.mxu0 0.0
    %502 = vmatpush1.msra.mxu0 0.0
    %503 = vmatprep.subr.mxu0 0.0
    %504 = vmatpush1.msra.mxu0 0.0
    %505 = vmatprep.subr.mxu0 0.0
    %506 = vmatpush1.msra.mxu0 0.0
    %507 = vmatprep.subr.mxu0 0.0
    %508 = vmatpush1.msra.mxu0 0.0
    %509 = vmatprep.mubr.f32.mxu0 0.0
    %v510 = vand.u32 %v68, 4294901760
    %511 = vmatmul.mubr.f32.gmra.mrb[0].mxu0 %v510
    %v512 = vpop.f32.mrb[0].mxu0
    %v513 = vadd.f32 %v441, %v512
    %v514 = vpop.f32.mrb[0].mxu0
    %515 = vdwg.mxu0
    %516 = vadd.xlane.f32.xlu0 %v513
    %v517 = vpop.xlane.xlu0 %516
    %v518 = vrcp.pop 128.0
    %v519 = vmul.f32 %v517, %v518
    %v520 = vsub.f32 %v513, %v519
    %v521 = vmul.f32 %v520, %v520
    %522 = vadd.xlane.f32.xlu0 %v521
    %v523 = vpop.xlane.xlu0 %522
    %v524 = vmul.f32 %v523, %v518
    %v525 = vld [vmem:[%s2] sm:$0xff]
    %v526 = vadd.f32 %v524, 1e-05
    %v527 = vrsqrt.pop %v526
    %v528 = vmul.f32 %v525, %v527
    %v529 = vld [vmem:[%s3] sm:$0xff]
    %v530 = vmul.f32 %v519, %v528
    %v531 = vsub.f32 %v529, %v530
    %533 = vset.pattern.permute.xlu0 0
    %534 = vperm.xlu0 %533, %v528
    %v535 = vpop.permute.xlu0 %534
    %v537 = vmul.f32 %v513, %v535
    %539 = vset.pattern.permute.xlu0 0
    %540 = vperm.xlu0 %539, %v531
    %v541 = vpop.permute.xlu0 %540
    %v543 = vadd.f32 %v537, %v541
    %v544 = vmax.f32 %v543, 0.0
    %v546 = vrot.slane %v544, 1
    %547 = vrot.lane.b32.xlu0 %v546, 64
    %v548 = vpop.permute.xlu0 %547
    %v550 = vrot.slane %v544, 2
    %v552 = vrot.slane %v544, 3
    %553 = vrot.lane.b32.xlu0 %v552, 64
    %v554 = vpop.permute.xlu0 %553
    %v556 = vrot.slane %v544, 4
    %v558 = vrot.slane %v544, 5
    %559 = vrot.lane.b32.xlu0 %v558, 64
    %v560 = vpop.permute.xlu0 %559
    %v562 = vrot.slane %v544, 6
    %v564 = vrot.slane %v544, 7
    %565 = vrot.lane.b32.xlu0 %v564, 64
    %v566 = vpop.permute.xlu0 %565
    %vm568 = vcmask 523264
    %v569 = vsel %vm568, %v544, %v548
    %v570 = vsel %vm568, %v550, %v554
    %v571 = vsel %vm568, %v556, %v560
    %v572 = vsel %vm568, %v562, %v566
    %573 = vrot.lane.b32.xlu0 %v544, 64
    %v574 = vpop.permute.xlu0 %573
    %577 = vrot.lane.b32.xlu0 %v550, 64
    %v578 = vpop.permute.xlu0 %577
    %581 = vrot.lane.b32.xlu0 %v556, 64
    %v582 = vpop.permute.xlu0 %581
    %585 = vrot.lane.b32.xlu0 %v562, 64
    %v586 = vpop.permute.xlu0 %585
    %v589 = vsel %vm568, %v574, %v546
    %v590 = vsel %vm568, %v578, %v552
    %v591 = vsel %vm568, %v582, %v558
    %v592 = vsel %vm568, %v586, %v564
    %v597 = vrot.slane %v589, 7
    %v598 = vrot.slane %v590, 7
    %v599 = vrot.slane %v591, 7
    %v600 = vrot.slane %v592, 7
    %vm605 = vcmask 1040384
    %v606 = vsel %vm605, %v569, %v597
    %v607 = vsel %vm605, %v570, %v598
    %v608 = vsel %vm605, %v571, %v599
    %v609 = vsel %vm605, %v572, %v600
    %s610 = smul.u32 4, 64
    %s611 = smul.u32 %s610, 4
    %s612 = sshll.u32 %s611, 4
    %613 = dma.done [#allocation3], %s612
    %v614 = vpack.c.bf16 %v606, %v606
    %v615 = vpack.c.bf16 %v607, %v607
    %v616 = vpack.c.bf16 %v608, %v608
    %v617 = vpack.c.bf16 %v609, %v609
    %v618 = vld [vmem:[#allocation2] sm:$0xff]
    %v619 = vld [vmem:[#allocation2 + $0x8] sm:$0xff]
    %v620 = vld [vmem:[#allocation2 + $0x10] sm:$0xff]
    %v621 = vld [vmem:[#allocation2 + $0x18] sm:$0xff]
    %v622 = vld [vmem:[#allocation2 + $0x20] sm:$0xff]
    %v623 = vld [vmem:[#allocation2 + $0x28] sm:$0xff]
    %v624 = vld [vmem:[#allocation2 + $0x30] sm:$0xff]
    %v625 = vld [vmem:[#allocation2 + $0x38] sm:$0xff]
    %v626 = vld [vmem:[#allocation2 + $0x40] sm:$0xff]
    %v627 = vld [vmem:[#allocation2 + $0x48] sm:$0xff]
    %v628 = vld [vmem:[#allocation2 + $0x50] sm:$0xff]
    %v629 = vld [vmem:[#allocation2 + $0x58] sm:$0xff]
    %v630 = vld [vmem:[#allocation2 + $0x60] sm:$0xff]
    %v631 = vld [vmem:[#allocation2 + $0x68] sm:$0xff]
    %v632 = vld [vmem:[#allocation2 + $0x70] sm:$0xff]
    %v633 = vld [vmem:[#allocation2 + $0x78] sm:$0xff]
    %v634 = vld [vmem:[#allocation2 + $0x80] sm:$0xff]
    %v635 = vld [vmem:[#allocation2 + $0x88] sm:$0xff]
    %v636 = vld [vmem:[#allocation2 + $0x90] sm:$0xff]
    %v637 = vld [vmem:[#allocation2 + $0x98] sm:$0xff]
    %v638 = vld [vmem:[#allocation2 + $0xa0] sm:$0xff]
    %v639 = vld [vmem:[#allocation2 + $0xa8] sm:$0xff]
    %v640 = vld [vmem:[#allocation2 + $0xb0] sm:$0xff]
    %v641 = vld [vmem:[#allocation2 + $0xb8] sm:$0xff]
    %v642 = vld [vmem:[#allocation2 + $0xc0] sm:$0xff]
    %v643 = vld [vmem:[#allocation2 + $0xc8] sm:$0xff]
    %v644 = vld [vmem:[#allocation2 + $0xd0] sm:$0xff]
    %v645 = vld [vmem:[#allocation2 + $0xd8] sm:$0xff]
    %v646 = vld [vmem:[#allocation2 + $0xe0] sm:$0xff]
    %v647 = vld [vmem:[#allocation2 + $0xe8] sm:$0xff]
    %v648 = vld [vmem:[#allocation2 + $0xf0] sm:$0xff]
    %v649 = vld [vmem:[#allocation2 + $0xf8] sm:$0xff]
    %v650 = vld [vmem:[#allocation2 + $0x100] sm:$0xff]
    %v651 = vld [vmem:[#allocation2 + $0x108] sm:$0xff]
    %v652 = vld [vmem:[#allocation2 + $0x110] sm:$0xff]
    %v653 = vld [vmem:[#allocation2 + $0x118] sm:$0xff]
    %v654 = vld [vmem:[#allocation2 + $0x120] sm:$0xff]
    %v655 = vld [vmem:[#allocation2 + $0x128] sm:$0xff]
    %v656 = vld [vmem:[#allocation2 + $0x130] sm:$0xff]
    %v657 = vld [vmem:[#allocation2 + $0x138] sm:$0xff]
    %v658 = vld [vmem:[#allocation2 + $0x140] sm:$0xff]
    %v659 = vld [vmem:[#allocation2 + $0x148] sm:$0xff]
    %v660 = vld [vmem:[#allocation2 + $0x150] sm:$0xff]
    %v661 = vld [vmem:[#allocation2 + $0x158] sm:$0xff]
    %v662 = vld [vmem:[#allocation2 + $0x160] sm:$0xff]
    %v663 = vld [vmem:[#allocation2 + $0x168] sm:$0xff]
    %v664 = vld [vmem:[#allocation2 + $0x170] sm:$0xff]
    %v665 = vld [vmem:[#allocation2 + $0x178] sm:$0xff]
    %v666 = vld [vmem:[#allocation2 + $0x180] sm:$0xff]
    %v667 = vld [vmem:[#allocation2 + $0x188] sm:$0xff]
    %v668 = vld [vmem:[#allocation2 + $0x190] sm:$0xff]
    %v669 = vld [vmem:[#allocation2 + $0x198] sm:$0xff]
    %v670 = vld [vmem:[#allocation2 + $0x1a0] sm:$0xff]
    %v671 = vld [vmem:[#allocation2 + $0x1a8] sm:$0xff]
    %v672 = vld [vmem:[#allocation2 + $0x1b0] sm:$0xff]
    %v673 = vld [vmem:[#allocation2 + $0x1b8] sm:$0xff]
    %v674 = vld [vmem:[#allocation2 + $0x1c0] sm:$0xff]
    %v675 = vld [vmem:[#allocation2 + $0x1c8] sm:$0xff]
    %v676 = vld [vmem:[#allocation2 + $0x1d0] sm:$0xff]
    %v677 = vld [vmem:[#allocation2 + $0x1d8] sm:$0xff]
    %v678 = vld [vmem:[#allocation2 + $0x1e0] sm:$0xff]
    %v679 = vld [vmem:[#allocation2 + $0x1e8] sm:$0xff]
    %v680 = vld [vmem:[#allocation2 + $0x1f0] sm:$0xff]
    %v681 = vld [vmem:[#allocation2 + $0x1f8] sm:$0xff]
    %v682 = vld [vmem:[#allocation2 + $0x200] sm:$0xff]
    %v683 = vld [vmem:[#allocation2 + $0x208] sm:$0xff]
    %v684 = vld [vmem:[#allocation2 + $0x210] sm:$0xff]
    %v685 = vld [vmem:[#allocation2 + $0x218] sm:$0xff]
    %v686 = vld [vmem:[#allocation2 + $0x220] sm:$0xff]
    %v687 = vld [vmem:[#allocation2 + $0x228] sm:$0xff]
    %v688 = vld [vmem:[#allocation2 + $0x230] sm:$0xff]
    %v689 = vld [vmem:[#allocation2 + $0x238] sm:$0xff]
    %v690 = vld [vmem:[#allocation2 + $0x240] sm:$0xff]
    %v691 = vld [vmem:[#allocation2 + $0x248] sm:$0xff]
    %v692 = vld [vmem:[#allocation2 + $0x250] sm:$0xff]
    %v693 = vld [vmem:[#allocation2 + $0x258] sm:$0xff]
    %v694 = vld [vmem:[#allocation2 + $0x260] sm:$0xff]
    %v695 = vld [vmem:[#allocation2 + $0x268] sm:$0xff]
    %v696 = vld [vmem:[#allocation2 + $0x270] sm:$0xff]
    %v697 = vld [vmem:[#allocation2 + $0x278] sm:$0xff]
    %v698 = vld [vmem:[#allocation2 + $0x280] sm:$0xff]
    %v699 = vld [vmem:[#allocation2 + $0x288] sm:$0xff]
    %v700 = vld [vmem:[#allocation2 + $0x290] sm:$0xff]
    %v701 = vld [vmem:[#allocation2 + $0x298] sm:$0xff]
    %v702 = vld [vmem:[#allocation2 + $0x2a0] sm:$0xff]
    %v703 = vld [vmem:[#allocation2 + $0x2a8] sm:$0xff]
    %v704 = vld [vmem:[#allocation2 + $0x2b0] sm:$0xff]
    %v705 = vld [vmem:[#allocation2 + $0x2b8] sm:$0xff]
    %v706 = vld [vmem:[#allocation2 + $0x2c0] sm:$0xff]
    %v707 = vld [vmem:[#allocation2 + $0x2c8] sm:$0xff]
    %v708 = vld [vmem:[#allocation2 + $0x2d0] sm:$0xff]
    %v709 = vld [vmem:[#allocation2 + $0x2d8] sm:$0xff]
    %v710 = vld [vmem:[#allocation2 + $0x2e0] sm:$0xff]
    %v711 = vld [vmem:[#allocation2 + $0x2e8] sm:$0xff]
    %v712 = vld [vmem:[#allocation2 + $0x2f0] sm:$0xff]
    %v713 = vld [vmem:[#allocation2 + $0x2f8] sm:$0xff]
    %v714 = vld [vmem:[#allocation2 + $0x300] sm:$0xff]
    %v715 = vld [vmem:[#allocation2 + $0x308] sm:$0xff]
    %v716 = vld [vmem:[#allocation2 + $0x310] sm:$0xff]
    %v717 = vld [vmem:[#allocation2 + $0x318] sm:$0xff]
    %v718 = vld [vmem:[#allocation2 + $0x320] sm:$0xff]
    %v719 = vld [vmem:[#allocation2 + $0x328] sm:$0xff]
    %v720 = vld [vmem:[#allocation2 + $0x330] sm:$0xff]
    %v721 = vld [vmem:[#allocation2 + $0x338] sm:$0xff]
    %v722 = vld [vmem:[#allocation2 + $0x340] sm:$0xff]
    %v723 = vld [vmem:[#allocation2 + $0x348] sm:$0xff]
    %v724 = vld [vmem:[#allocation2 + $0x350] sm:$0xff]
    %v725 = vld [vmem:[#allocation2 + $0x358] sm:$0xff]
    %v726 = vld [vmem:[#allocation2 + $0x360] sm:$0xff]
    %v727 = vld [vmem:[#allocation2 + $0x368] sm:$0xff]
    %v728 = vld [vmem:[#allocation2 + $0x370] sm:$0xff]
    %v729 = vld [vmem:[#allocation2 + $0x378] sm:$0xff]
    %v730 = vld [vmem:[#allocation2 + $0x380] sm:$0xff]
    %v731 = vld [vmem:[#allocation2 + $0x388] sm:$0xff]
    %v732 = vld [vmem:[#allocation2 + $0x390] sm:$0xff]
    %v733 = vld [vmem:[#allocation2 + $0x398] sm:$0xff]
    %v734 = vld [vmem:[#allocation2 + $0x3a0] sm:$0xff]
    %v735 = vld [vmem:[#allocation2 + $0x3a8] sm:$0xff]
    %v736 = vld [vmem:[#allocation2 + $0x3b0] sm:$0xff]
    %v737 = vld [vmem:[#allocation2 + $0x3b8] sm:$0xff]
    %v738 = vld [vmem:[#allocation2 + $0x3c0] sm:$0xff]
    %v739 = vld [vmem:[#allocation2 + $0x3c8] sm:$0xff]
    %v740 = vld [vmem:[#allocation2 + $0x3d0] sm:$0xff]
    %v741 = vld [vmem:[#allocation2 + $0x3d8] sm:$0xff]
    %v742 = vld [vmem:[#allocation2 + $0x3e0] sm:$0xff]
    %v743 = vld [vmem:[#allocation2 + $0x3e8] sm:$0xff]
    %v744 = vld [vmem:[#allocation2 + $0x3f0] sm:$0xff]
    %v745 = vld [vmem:[#allocation2 + $0x3f8] sm:$0xff]
    %v746 = vld [vmem:[%s5] sm:$0xf]
    %v748 = vlaneseq
    %v749 = vshrl.u32 %v748, 7
    %v750 = vsub.s32 0, %v749
    %v751 = vrot.slane %v746, %v750
    %v752 = vlaneseq
    %v753 = vshrl.u32 %v752, 7
    %v754 = vsub.s32 1, %v753
    %v755 = vrot.slane %v746, %v754
    %v756 = vlaneseq
    %v757 = vshrl.u32 %v756, 7
    %v758 = vsub.s32 2, %v757
    %v759 = vrot.slane %v746, %v758
    %v760 = vlaneseq
    %v761 = vshrl.u32 %v760, 7
    %v762 = vsub.s32 3, %v761
    %v763 = vrot.slane %v746, %v762
    %768 = vmatprep.subr.bf16.mxu0 %v619
    %769 = vmatpush1.bf16.msra.mxu0 %v618
    %770 = vmatprep.subr.bf16.mxu0 %v623
    %771 = vmatpush1.bf16.msra.mxu0 %v622
    %772 = vmatprep.subr.bf16.mxu0 %v627
    %773 = vmatpush1.bf16.msra.mxu0 %v626
    %774 = vmatprep.subr.bf16.mxu0 %v631
    %775 = vmatpush1.bf16.msra.mxu0 %v630
    %776 = vmatprep.subr.bf16.mxu0 %v635
    %777 = vmatpush1.bf16.msra.mxu0 %v634
    %778 = vmatprep.subr.bf16.mxu0 %v639
    %779 = vmatpush1.bf16.msra.mxu0 %v638
    %780 = vmatprep.subr.bf16.mxu0 %v643
    %781 = vmatpush1.bf16.msra.mxu0 %v642
    %782 = vmatprep.subr.bf16.mxu0 %v647
    %783 = vmatpush1.bf16.msra.mxu0 %v646
    %784 = vmatprep.subr.bf16.mxu0 %v651
    %785 = vmatpush1.bf16.msra.mxu0 %v650
    %786 = vmatprep.subr.bf16.mxu0 %v655
    %787 = vmatpush1.bf16.msra.mxu0 %v654
    %788 = vmatprep.subr.bf16.mxu0 %v659
    %789 = vmatpush1.bf16.msra.mxu0 %v658
    %790 = vmatprep.subr.bf16.mxu0 %v663
    %791 = vmatpush1.bf16.msra.mxu0 %v662
    %792 = vmatprep.subr.bf16.mxu0 %v667
    %793 = vmatpush1.bf16.msra.mxu0 %v666
    %794 = vmatprep.subr.bf16.mxu0 %v671
    %795 = vmatpush1.bf16.msra.mxu0 %v670
    %796 = vmatprep.subr.bf16.mxu0 %v675
    %797 = vmatpush1.bf16.msra.mxu0 %v674
    %798 = vmatprep.subr.bf16.mxu0 %v679
    %799 = vmatpush1.bf16.msra.mxu0 %v678
    %800 = vmatprep.mubr.bf16.mxu0 %v615
    %801 = vmatmul.mubr.bf16.gmra.mrb[0].mxu0 %v614
    %v802 = vpop.f32.mrb[0].mxu0
    %v803 = vadd.f32 %v751, %v802
    %v804 = vpop.f32.mrb[0].mxu0
    %v805 = vadd.f32 %v755, %v804
    %v806 = vpop.f32.mrb[0].mxu0
    %v807 = vpop.f32.mrb[0].mxu0
    %808 = vdwg.mxu0
    %809 = vmatprep.subr.bf16.mxu0 %v683
    %810 = vmatpush1.bf16.msra.mxu0 %v682
    %811 = vmatprep.subr.bf16.mxu0 %v687
    %812 = vmatpush1.bf16.msra.mxu0 %v686
    %813 = vmatprep.subr.bf16.mxu0 %v691
    %814 = vmatpush1.bf16.msra.mxu0 %v690
    %815 = vmatprep.subr.bf16.mxu0 %v695
    %816 = vmatpush1.bf16.msra.mxu0 %v694
    %817 = vmatprep.subr.bf16.mxu0 %v699
    %818 = vmatpush1.bf16.msra.mxu0 %v698
    %819 = vmatprep.subr.bf16.mxu0 %v703
    %820 = vmatpush1.bf16.msra.mxu0 %v702
    %821 = vmatprep.subr.bf16.mxu0 %v707
    %822 = vmatpush1.bf16.msra.mxu0 %v706
    %823 = vmatprep.subr.bf16.mxu0 %v711
    %824 = vmatpush1.bf16.msra.mxu0 %v710
    %825 = vmatprep.subr.bf16.mxu0 %v715
    %826 = vmatpush1.bf16.msra.mxu0 %v714
    %827 = vmatprep.subr.bf16.mxu0 %v719
    %828 = vmatpush1.bf16.msra.mxu0 %v718
    %829 = vmatprep.subr.bf16.mxu0 %v723
    %830 = vmatpush1.bf16.msra.mxu0 %v722
    %831 = vmatprep.subr.bf16.mxu0 %v727
    %832 = vmatpush1.bf16.msra.mxu0 %v726
    %833 = vmatprep.subr.bf16.mxu0 %v731
    %834 = vmatpush1.bf16.msra.mxu0 %v730
    %835 = vmatprep.subr.bf16.mxu0 %v735
    %836 = vmatpush1.bf16.msra.mxu0 %v734
    %837 = vmatprep.subr.bf16.mxu0 %v739
    %838 = vmatpush1.bf16.msra.mxu0 %v738
    %839 = vmatprep.subr.bf16.mxu0 %v743
    %840 = vmatpush1.bf16.msra.mxu0 %v742
    %841 = vmatprep.mubr.bf16.mxu0 %v617
    %842 = vmatmul.mubr.bf16.gmra.mrb[0].mxu0 %v616
    %v843 = vpop.f32.mrb[0].mxu0
    %v844 = vadd.f32 %v803, %v843
    %v845 = vpop.f32.mrb[0].mxu0
    %v846 = vadd.f32 %v805, %v845
    %v847 = vpop.f32.mrb[0].mxu0
    %v848 = vpop.f32.mrb[0].mxu0
    %849 = vdwg.mxu0
    %850 = vmatprep.subr.bf16.mxu0 %v621
    %851 = vmatpush1.bf16.msra.mxu0 %v620
    %852 = vmatprep.subr.bf16.mxu0 %v625
    %853 = vmatpush1.bf16.msra.mxu0 %v624
    %854 = vmatprep.subr.bf16.mxu0 %v629
    %855 = vmatpush1.bf16.msra.mxu0 %v628
    %856 = vmatprep.subr.bf16.mxu0 %v633
    %857 = vmatpush1.bf16.msra.mxu0 %v632
    %858 = vmatprep.subr.bf16.mxu0 %v637
    %859 = vmatpush1.bf16.msra.mxu0 %v636
    %860 = vmatprep.subr.bf16.mxu0 %v641
    %861 = vmatpush1.bf16.msra.mxu0 %v640
    %862 = vmatprep.subr.bf16.mxu0 %v645
    %863 = vmatpush1.bf16.msra.mxu0 %v644
    %864 = vmatprep.subr.bf16.mxu0 %v649
    %865 = vmatpush1.bf16.msra.mxu0 %v648
    %866 = vmatprep.subr.bf16.mxu0 %v653
    %867 = vmatpush1.bf16.msra.mxu0 %v652
    %868 = vmatprep.subr.bf16.mxu0 %v657
    %869 = vmatpush1.bf16.msra.mxu0 %v656
    %870 = vmatprep.subr.bf16.mxu0 %v661
    %871 = vmatpush1.bf16.msra.mxu0 %v660
    %872 = vmatprep.subr.bf16.mxu0 %v665
    %873 = vmatpush1.bf16.msra.mxu0 %v664
    %874 = vmatprep.subr.bf16.mxu0 %v669
    %875 = vmatpush1.bf16.msra.mxu0 %v668
    %876 = vmatprep.subr.bf16.mxu0 %v673
    %877 = vmatpush1.bf16.msra.mxu0 %v672
    %878 = vmatprep.subr.bf16.mxu0 %v677
    %879 = vmatpush1.bf16.msra.mxu0 %v676
    %880 = vmatprep.subr.bf16.mxu0 %v681
    %881 = vmatpush1.bf16.msra.mxu0 %v680
    %882 = vmatprep.mubr.bf16.mxu0 %v615
    %883 = vmatmul.mubr.bf16.gmra.mrb[0].mxu0 %v614
    %v884 = vpop.f32.mrb[0].mxu0
    %v885 = vadd.f32 %v759, %v884
    %v886 = vpop.f32.mrb[0].mxu0
    %v887 = vadd.f32 %v763, %v886
    %v888 = vpop.f32.mrb[0].mxu0
    %v889 = vpop.f32.mrb[0].mxu0
    %890 = vdwg.mxu0
    %891 = vmatprep.subr.bf16.mxu0 %v685
    %892 = vmatpush1.bf16.msra.mxu0 %v684
    %893 = vmatprep.subr.bf16.mxu0 %v689
    %894 = vmatpush1.bf16.msra.mxu0 %v688
    %895 = vmatprep.subr.bf16.mxu0 %v693
    %896 = vmatpush1.bf16.msra.mxu0 %v692
    %897 = vmatprep.subr.bf16.mxu0 %v697
    %898 = vmatpush1.bf16.msra.mxu0 %v696
    %899 = vmatprep.subr.bf16.mxu0 %v701
    %900 = vmatpush1.bf16.msra.mxu0 %v700
    %901 = vmatprep.subr.bf16.mxu0 %v705
    %902 = vmatpush1.bf16.msra.mxu0 %v704
    %903 = vmatprep.subr.bf16.mxu0 %v709
    %904 = vmatpush1.bf16.msra.mxu0 %v708
    %905 = vmatprep.subr.bf16.mxu0 %v713
    %906 = vmatpush1.bf16.msra.mxu0 %v712
    %907 = vmatprep.subr.bf16.mxu0 %v717
    %908 = vmatpush1.bf16.msra.mxu0 %v716
    %909 = vmatprep.subr.bf16.mxu0 %v721
    %910 = vmatpush1.bf16.msra.mxu0 %v720
    %911 = vmatprep.subr.bf16.mxu0 %v725
    %912 = vmatpush1.bf16.msra.mxu0 %v724
    %913 = vmatprep.subr.bf16.mxu0 %v729
    %914 = vmatpush1.bf16.msra.mxu0 %v728
    %915 = vmatprep.subr.bf16.mxu0 %v733
    %916 = vmatpush1.bf16.msra.mxu0 %v732
    %917 = vmatprep.subr.bf16.mxu0 %v737
    %918 = vmatpush1.bf16.msra.mxu0 %v736
    %919 = vmatprep.subr.bf16.mxu0 %v741
    %920 = vmatpush1.bf16.msra.mxu0 %v740
    %921 = vmatprep.subr.bf16.mxu0 %v745
    %922 = vmatpush1.bf16.msra.mxu0 %v744
    %923 = vmatprep.mubr.bf16.mxu0 %v617
    %924 = vmatmul.mubr.bf16.gmra.mrb[0].mxu0 %v616
    %v925 = vpop.f32.mrb[0].mxu0
    %v926 = vadd.f32 %v885, %v925
    %v927 = vpop.f32.mrb[0].mxu0
    %v928 = vadd.f32 %v887, %v927
    %v929 = vpop.f32.mrb[0].mxu0
    %v930 = vpop.f32.mrb[0].mxu0
    %931 = vdwg.mxu0
    %v932 = vmax.f32 %v844, 0.0
    %v933 = vmax.f32 %v846, 0.0
    %v934 = vmax.f32 %v926, 0.0
    %v935 = vmax.f32 %v928, 0.0
    %v936 = vld [vmem:[%s6] sm:$0xf]
    %v938 = vlaneseq
    %v939 = vshrl.u32 %v938, 7
    %v940 = vsub.s32 0, %v939
    %v941 = vrot.slane %v936, %v940
    %v942 = vlaneseq
    %v943 = vshrl.u32 %v942, 7
    %v944 = vsub.s32 1, %v943
    %v945 = vrot.slane %v936, %v944
    %v946 = vlaneseq
    %v947 = vshrl.u32 %v946, 7
    %v948 = vsub.s32 2, %v947
    %v949 = vrot.slane %v936, %v948
    %v950 = vlaneseq
    %v951 = vshrl.u32 %v950, 7
    %v952 = vsub.s32 3, %v951
    %v953 = vrot.slane %v936, %v952
    %v958 = vmul.f32 %v932, %v941
    %v959 = vmul.f32 %v933, %v945
    %v960 = vmul.f32 %v934, %v949
    %v961 = vmul.f32 %v935, %v953
    %vm962 = vcmask 1041408
    %v963 = vsel %vm962, %v958, 0.0
    %v964 = vsel %vm962, %v959, 0.0
    %v965 = vadd.f32 %v963, %v964
    %v966 = vsel %vm962, %v960, 0.0
    %v967 = vadd.f32 %v965, %v966
    %v968 = vsel %vm962, %v961, 0.0
    %v969 = vadd.f32 %v967, %v968
    %970 = vadd.xlane.f32.xlu0 %v969
    %v971 = vpop.xlane.xlu0 %970
    %v972 = vld [vmem:[#allocation4] sm:$0x1]
    %v974 = vlaneseq
    %v975 = vshrl.u32 %v974, 7
    %v976 = vsub.s32 0, %v975
    %v977 = vrot.slane %v972, %v976
    %v979 = vadd.f32 %v971, %v977
    %v980 = vtanh.pop %v979
    %vm981 = vcmask 1024
    %982 = vst.msk [vmem:[%s8] sm:$0x3] %vm981, %v980
    // Predicated region
    $region30: #{output_forward.1} parent=1 // pred_check
      _
    $region31: #{output_forward.1} parent=1 // pred_check_branch
      %984 = sbr.rel (0) target = $region33
    $region32: #{output_forward.1} parent=1 // pred_region
      _
    $region33: #{output_forward.1} parent=1 // pred_fallthru
      _
    // Predicated region
    $region34: #{output_forward.1} parent=1 // pred_check
      _
    $region35: #{output_forward.1} parent=1 // pred_check_branch
      %986 = sbr.rel (0) target = $region37
    $region36: #{output_forward.1} parent=1 // pred_region
      _
    $region37: #{output_forward.1} parent=1 // pred_fallthru
      _
  %987 = vsyncmov [#allocation3]
  %s988 = vpop.sfrf %987
  %p989 = scmp.eq.s32.totalorder %s988, 0
  %p990 = pneg %p989
  %992 = shalt.err (%p990)

</llo_original>
